<compile_context>
chip_gen: v6e
topology: v6e:2x2x1
jax: 0.10.0
libtpu: 0.0.40
codegen_flags: <defaults>
</compile_context>

<pallas_src>
import jax
import jax.numpy as jnp
from jax.experimental import pallas as pl
from jax.experimental.pallas import tpu as pltpu


def _round_up(n, m):
    return ((n + m - 1) // m) * m


def _choose_tile_b(batch):
    """Large tiles amortize per-step overhead; keep >=2 steps for big batches
    so the 'parallel' batch axis can shard across both v7x TensorCores."""
    if batch <= 512:
        return _round_up(max(batch, 8), 8)             # single tile, sublane-aligned
    tile = min(2048, _round_up(pl.cdiv(batch, 2), 256))  # >=2 grid steps
    return max(tile, 256)


def predictor_kernel(
    x_ref,
    we_ref, be_ref,
    w1_ref, b1_ref,
    w2_ref, b2_ref,
    w3_ref, b3_ref,
    w4_ref, b4_ref,
    wh_ref, bh_ref,
    z_ref, out_ref,
):
    x = x_ref[...]                                      # f32 (TILE_B, in_dim)

    # embed: f32 dot (tiny K) so z matches the PyTorch f32 Linear; z is pre-ReLU
    z = jnp.dot(x, we_ref[...], preferred_element_type=jnp.float32) + be_ref[...]
    z_ref[...] = z

    def lin_relu(h_bf16, w_ref, b_ref):
        a = jnp.dot(h_bf16, w_ref[...],
                    preferred_element_type=jnp.float32) + b_ref[...]
        return jnp.maximum(a, 0.0).astype(jnp.bfloat16)

    h = jnp.maximum(z, 0.0).astype(jnp.bfloat16)
    h = lin_relu(h, w1_ref, b1_ref)
    h = lin_relu(h, w2_ref, b2_ref)
    h = lin_relu(h, w3_ref, b3_ref)
    h = lin_relu(h, w4_ref, b4_ref)

    # head (f32 accumulation, f32 bias-add, stored as f32)
    out_ref[...] = jnp.dot(h, wh_ref[...],
                           preferred_element_type=jnp.float32) + bh_ref[...]


@jax.jit
def predictor_forward(x, params):
    """x: [B, in_dim] f32.  params: weights [in, out] f32, biases [1, out] f32.

    Returns (z [B, embed_dim] f32, out [B, out_dim] f32).
    """
    B, in_dim = x.shape
    embed_dim = params["w_embed"].shape[1]
    out_dim = params["w_head"].shape[1]

    tile_b = _choose_tile_b(B)
    grid = (pl.cdiv(B, tile_b),)

    # embed weight stays f32 (z fidelity); remaining weights bf16; biases f32.
    we = params["w_embed"]
    be = params["b_embed"]
    w1 = params["w1"].astype(jnp.bfloat16)
    b1 = params["b1"]
    w2 = params["w2"].astype(jnp.bfloat16)
    b2 = params["b2"]
    w3 = params["w3"].astype(jnp.bfloat16)
    b3 = params["b3"]
    w4 = params["w4"].astype(jnp.bfloat16)
    b4 = params["b4"]
    wh = params["w_head"].astype(jnp.bfloat16)
    bh = params["b_head"]

    weights = (we, be, w1, b1, w2, b2, w3, b3, w4, b4, wh, bh)

    # Batch-tiled narrow (full-last-dim) blocks for x / z / out; weights are
    # full-shape grid-invariant residents (constant block index -> no re-DMA).
    x_spec = pl.BlockSpec((tile_b, in_dim), lambda i: (i, 0))
    z_spec = pl.BlockSpec((tile_b, embed_dim), lambda i: (i, 0))
    o_spec = pl.BlockSpec((tile_b, out_dim), lambda i: (i, 0))
    w_specs = [pl.BlockSpec(w.shape, lambda i: (0, 0)) for w in weights]

    z_out, out = pl.pallas_call(
        predictor_kernel,
        out_shape=(
            jax.ShapeDtypeStruct((B, embed_dim), jnp.float32),
            jax.ShapeDtypeStruct((B, out_dim), jnp.float32),
        ),
        grid=grid,
        in_specs=[x_spec] + w_specs,
        out_specs=(z_spec, o_spec),
        compiler_params=pltpu.CompilerParams(
            dimension_semantics=("parallel",),      # megacore sharding on v7x
            vmem_limit_bytes=32 * 1024 * 1024,      # safe on all generations
        ),
    )(x, *weights)

    return z_out, out


def init_params(key, in_dim, embed_dim, out_dim):
    """Deterministic synthetic parameter init (matches nn.Linear shapes)."""
    dims = [
        ("w_embed", "b_embed", in_dim, embed_dim),
        ("w1", "b1", embed_dim, embed_dim),
        ("w2", "b2", embed_dim, embed_dim),
        ("w3", "b3", embed_dim, 256),
        ("w4", "b4", 256, 128),
        ("w_head", "b_head", 128, out_dim),
    ]
    params = {}
    for wname, bname, d_in, d_out in dims:
        key, kw, kb = jax.random.split(key, 3)
        params[wname] = jax.random.normal(kw, (d_in, d_out), jnp.float32) * 0.05
        params[bname] = jax.random.normal(kb, (1, d_out), jnp.float32) * 0.01
    return params


def reference_forward(x, p):
    """Plain-JAX reference mirroring the kernel's precision choices."""
    z = jnp.dot(x, p["w_embed"], preferred_element_type=jnp.float32) + p["b_embed"]

    def lin(h, w, b):
        return jnp.dot(h.astype(jnp.bfloat16), w.astype(jnp.bfloat16),
                       preferred_element_type=jnp.float32) + b

    h = jnp.maximum(z, 0.0)
    h = jnp.maximum(lin(h, p["w1"], p["b1"]), 0.0)
    h = jnp.maximum(lin(h, p["w2"], p["b2"]), 0.0)
    h = jnp.maximum(lin(h, p["w3"], p["b3"]), 0.0)
    h = jnp.maximum(lin(h, p["w4"], p["b4"]), 0.0)
    out = lin(h, p["w_head"], p["b_head"])
    return z, out


if __name__ == "__main__":
    key = jax.random.PRNGKey(0)
    B, in_dim, embed_dim, out_dim = 8, 32, 64, 16

    key, kx = jax.random.split(key)
    x = jax.random.normal(kx, (B, in_dim), jnp.float32)
    params = init_params(key, in_dim, embed_dim, out_dim)

    z, out = predictor_forward(x, params)
    jax.block_until_ready((z, out))

    z_ref, out_ref = reference_forward(x, params)
    assert z.shape == (B, embed_dim) and out.shape == (B, out_dim)
    assert jnp.allclose(z, z_ref, atol=2e-3, rtol=2e-3)
    assert jnp.allclose(out, out_ref, atol=2e-3, rtol=2e-3)

    print("KERNEL_OK")
</pallas_src>

<mosaic_0001>
module attributes {stable_mosaic.version = 11 : i64} {
  func.func @predictor_kernel(%arg0: i32, %arg1: memref<8x32xf32, #tpu.memory_space<vmem>>, %arg2: memref<32x64xf32, #tpu.memory_space<vmem>>, %arg3: memref<1x64xf32, #tpu.memory_space<vmem>>, %arg4: memref<64x64xbf16, #tpu.memory_space<vmem>>, %arg5: memref<1x64xf32, #tpu.memory_space<vmem>>, %arg6: memref<64x64xbf16, #tpu.memory_space<vmem>>, %arg7: memref<1x64xf32, #tpu.memory_space<vmem>>, %arg8: memref<64x256xbf16, #tpu.memory_space<vmem>>, %arg9: memref<1x256xf32, #tpu.memory_space<vmem>>, %arg10: memref<256x128xbf16, #tpu.memory_space<vmem>>, %arg11: memref<1x128xf32, #tpu.memory_space<vmem>>, %arg12: memref<128x16xbf16, #tpu.memory_space<vmem>>, %arg13: memref<1x16xf32, #tpu.memory_space<vmem>>, %arg14: memref<8x64xf32, #tpu.memory_space<vmem>>, %arg15: memref<8x16xf32, #tpu.memory_space<vmem>>) attributes {dimension_semantics = [#tpu.dimension_semantics<parallel>], iteration_bounds = array<i64: 1>, scalar_prefetch = 0 : i64, scratch_operands = 0 : i64, tpu.core_type = #tpu.core_type<tc>, window_params = [{transform_indices = @transform_0, window_bounds = array<i64: 8, 32>}, {pipeline_mode = #tpu.pipeline_mode<synchronous>, transform_indices = @transform_1, window_bounds = array<i64: 32, 64>}, {pipeline_mode = #tpu.pipeline_mode<synchronous>, transform_indices = @transform_2, window_bounds = array<i64: 1, 64>}, {pipeline_mode = #tpu.pipeline_mode<synchronous>, transform_indices = @transform_3, window_bounds = array<i64: 64, 64>}, {pipeline_mode = #tpu.pipeline_mode<synchronous>, transform_indices = @transform_4, window_bounds = array<i64: 1, 64>}, {pipeline_mode = #tpu.pipeline_mode<synchronous>, transform_indices = @transform_5, window_bounds = array<i64: 64, 64>}, {pipeline_mode = #tpu.pipeline_mode<synchronous>, transform_indices = @transform_6, window_bounds = array<i64: 1, 64>}, {pipeline_mode = #tpu.pipeline_mode<synchronous>, transform_indices = @transform_7, window_bounds = array<i64: 64, 256>}, {pipeline_mode = #tpu.pipeline_mode<synchronous>, transform_indices = @transform_8, window_bounds = array<i64: 1, 256>}, {pipeline_mode = #tpu.pipeline_mode<synchronous>, transform_indices = @transform_9, window_bounds = array<i64: 256, 128>}, {pipeline_mode = #tpu.pipeline_mode<synchronous>, transform_indices = @transform_10, window_bounds = array<i64: 1, 128>}, {pipeline_mode = #tpu.pipeline_mode<synchronous>, transform_indices = @transform_11, window_bounds = array<i64: 128, 16>}, {pipeline_mode = #tpu.pipeline_mode<synchronous>, transform_indices = @transform_12, window_bounds = array<i64: 1, 16>}, {transform_indices = @transform_13, window_bounds = array<i64: 8, 64>}, {transform_indices = @transform_14, window_bounds = array<i64: 8, 16>}]} {
    %c0 = arith.constant 0 : index
    %c0_0 = arith.constant 0 : index
    %0 = vector.load %arg1[%c0, %c0_0] : memref<8x32xf32, #tpu.memory_space<vmem>>, vector<8x32xf32>
    %c0_1 = arith.constant 0 : index
    %c0_2 = arith.constant 0 : index
    %1 = vector.load %arg2[%c0_1, %c0_2] : memref<32x64xf32, #tpu.memory_space<vmem>>, vector<32x64xf32>
    %cst = arith.constant dense<0.000000e+00> : vector<8x64xf32>
    %2 = tpu.matmul %0, %1, %cst {dimension_numbers = #tpu.dot_dimension_numbers<[1], [0], [0], [1], [0, 0, 1, 1], [], []>} : vector<8x32xf32>, vector<32x64xf32>, vector<8x64xf32> -> vector<8x64xf32>
    %c0_3 = arith.constant 0 : index
    %c0_4 = arith.constant 0 : index
    %3 = vector.load %arg3[%c0_3, %c0_4] : memref<1x64xf32, #tpu.memory_space<vmem>>, vector<1x64xf32>
    %4 = vector.broadcast %3 : vector<1x64xf32> to vector<8x64xf32>
    %5 = arith.addf %2, %4 : vector<8x64xf32>
    %c0_5 = arith.constant 0 : index
    %c0_6 = arith.constant 0 : index
    %6 = vector.load %arg14[%c0_5, %c0_6] : memref<8x64xf32, #tpu.memory_space<vmem>>, vector<8x64xf32>
    tpu.vector_store %arg14[%c0_5, %c0_6], %5 {strides = array<i32>} : memref<8x64xf32, #tpu.memory_space<vmem>>, vector<8x64xf32>,
    %cst_7 = arith.constant 0.000000e+00 : f32
    %7 = vector.broadcast %cst_7 : f32 to vector<8x64xf32>
    %8 = arith.maximumf %5, %7 : vector<8x64xf32>
    %9 = arith.truncf %8 : vector<8x64xf32> to vector<8x64xbf16>
    %c0_8 = arith.constant 0 : index
    %c0_9 = arith.constant 0 : index
    %10 = vector.load %arg4[%c0_8, %c0_9] : memref<64x64xbf16, #tpu.memory_space<vmem>>, vector<64x64xbf16>
    %cst_10 = arith.constant dense<0.000000e+00> : vector<8x64xf32>
    %11 = tpu.matmul %9, %10, %cst_10 {dimension_numbers = #tpu.dot_dimension_numbers<[1], [0], [0], [1], [0, 0, 1, 1], [], []>} : vector<8x64xbf16>, vector<64x64xbf16>, vector<8x64xf32> -> vector<8x64xf32>
    %c0_11 = arith.constant 0 : index
    %c0_12 = arith.constant 0 : index
    %12 = vector.load %arg5[%c0_11, %c0_12] : memref<1x64xf32, #tpu.memory_space<vmem>>, vector<1x64xf32>
    %13 = vector.broadcast %12 : vector<1x64xf32> to vector<8x64xf32>
    %14 = arith.addf %11, %13 : vector<8x64xf32>
    %cst_13 = arith.constant 0.000000e+00 : f32
    %15 = vector.broadcast %cst_13 : f32 to vector<8x64xf32>
    %16 = arith.maximumf %14, %15 : vector<8x64xf32>
    %17 = arith.truncf %16 : vector<8x64xf32> to vector<8x64xbf16>
    %c0_14 = arith.constant 0 : index
    %c0_15 = arith.constant 0 : index
    %18 = vector.load %arg6[%c0_14, %c0_15] : memref<64x64xbf16, #tpu.memory_space<vmem>>, vector<64x64xbf16>
    %cst_16 = arith.constant dense<0.000000e+00> : vector<8x64xf32>
    %19 = tpu.matmul %17, %18, %cst_16 {dimension_numbers = #tpu.dot_dimension_numbers<[1], [0], [0], [1], [0, 0, 1, 1], [], []>} : vector<8x64xbf16>, vector<64x64xbf16>, vector<8x64xf32> -> vector<8x64xf32>
    %c0_17 = arith.constant 0 : index
    %c0_18 = arith.constant 0 : index
    %20 = vector.load %arg7[%c0_17, %c0_18] : memref<1x64xf32, #tpu.memory_space<vmem>>, vector<1x64xf32>
    %21 = vector.broadcast %20 : vector<1x64xf32> to vector<8x64xf32>
    %22 = arith.addf %19, %21 : vector<8x64xf32>
    %cst_19 = arith.constant 0.000000e+00 : f32
    %23 = vector.broadcast %cst_19 : f32 to vector<8x64xf32>
    %24 = arith.maximumf %22, %23 : vector<8x64xf32>
    %25 = arith.truncf %24 : vector<8x64xf32> to vector<8x64xbf16>
    %c0_20 = arith.constant 0 : index
    %c0_21 = arith.constant 0 : index
    %26 = vector.load %arg8[%c0_20, %c0_21] : memref<64x256xbf16, #tpu.memory_space<vmem>>, vector<64x256xbf16>
    %cst_22 = arith.constant dense<0.000000e+00> : vector<8x256xf32>
    %27 = tpu.matmul %25, %26, %cst_22 {dimension_numbers = #tpu.dot_dimension_numbers<[1], [0], [0], [1], [0, 0, 1, 1], [], []>} : vector<8x64xbf16>, vector<64x256xbf16>, vector<8x256xf32> -> vector<8x256xf32>
    %c0_23 = arith.constant 0 : index
    %c0_24 = arith.constant 0 : index
    %28 = vector.load %arg9[%c0_23, %c0_24] : memref<1x256xf32, #tpu.memory_space<vmem>>, vector<1x256xf32>
    %29 = vector.broadcast %28 : vector<1x256xf32> to vector<8x256xf32>
    %30 = arith.addf %27, %29 : vector<8x256xf32>
    %cst_25 = arith.constant 0.000000e+00 : f32
    %31 = vector.broadcast %cst_25 : f32 to vector<8x256xf32>
    %32 = arith.maximumf %30, %31 : vector<8x256xf32>
    %33 = arith.truncf %32 : vector<8x256xf32> to vector<8x256xbf16>
    %c0_26 = arith.constant 0 : index
    %c0_27 = arith.constant 0 : index
    %34 = vector.load %arg10[%c0_26, %c0_27] : memref<256x128xbf16, #tpu.memory_space<vmem>>, vector<256x128xbf16>
    %cst_28 = arith.constant dense<0.000000e+00> : vector<8x128xf32>
    %35 = tpu.matmul %33, %34, %cst_28 {dimension_numbers = #tpu.dot_dimension_numbers<[1], [0], [0], [1], [0, 0, 1, 1], [], []>} : vector<8x256xbf16>, vector<256x128xbf16>, vector<8x128xf32> -> vector<8x128xf32>
    %c0_29 = arith.constant 0 : index
    %c0_30 = arith.constant 0 : index
    %36 = vector.load %arg11[%c0_29, %c0_30] : memref<1x128xf32, #tpu.memory_space<vmem>>, vector<1x128xf32>
    %37 = vector.broadcast %36 : vector<1x128xf32> to vector<8x128xf32>
    %38 = arith.addf %35, %37 : vector<8x128xf32>
    %cst_31 = arith.constant 0.000000e+00 : f32
    %39 = vector.broadcast %cst_31 : f32 to vector<8x128xf32>
    %40 = arith.maximumf %38, %39 : vector<8x128xf32>
    %41 = arith.truncf %40 : vector<8x128xf32> to vector<8x128xbf16>
    %c0_32 = arith.constant 0 : index
    %c0_33 = arith.constant 0 : index
    %42 = vector.load %arg12[%c0_32, %c0_33] : memref<128x16xbf16, #tpu.memory_space<vmem>>, vector<128x16xbf16>
    %cst_34 = arith.constant dense<0.000000e+00> : vector<8x16xf32>
    %43 = tpu.matmul %41, %42, %cst_34 {dimension_numbers = #tpu.dot_dimension_numbers<[1], [0], [0], [1], [0, 0, 1, 1], [], []>} : vector<8x128xbf16>, vector<128x16xbf16>, vector<8x16xf32> -> vector<8x16xf32>
    %c0_35 = arith.constant 0 : index
    %c0_36 = arith.constant 0 : index
    %44 = vector.load %arg13[%c0_35, %c0_36] : memref<1x16xf32, #tpu.memory_space<vmem>>, vector<1x16xf32>
    %45 = vector.broadcast %44 : vector<1x16xf32> to vector<8x16xf32>
    %46 = arith.addf %43, %45 : vector<8x16xf32>
    %c0_37 = arith.constant 0 : index
    %c0_38 = arith.constant 0 : index
    %47 = vector.load %arg15[%c0_37, %c0_38] : memref<8x16xf32, #tpu.memory_space<vmem>>, vector<8x16xf32>
    tpu.vector_store %arg15[%c0_37, %c0_38], %46 {strides = array<i32>} : memref<8x16xf32, #tpu.memory_space<vmem>>, vector<8x16xf32>,
    return
  }
  func.func @transform_0(%arg0: i32) -> (i32, i32) {
    %c0_i32 = arith.constant 0 : i32
    %c0_i32_0 = arith.constant 0 : i32
    return %arg0, %c0_i32 : i32, i32
  }
  func.func @transform_1(%arg0: i32) -> (i32, i32) {
    %c0_i32 = arith.constant 0 : i32
    %c0_i32_0 = arith.constant 0 : i32
    %c0_i32_1 = arith.constant 0 : i32
    return %c0_i32, %c0_i32_0 : i32, i32
  }
  func.func @transform_2(%arg0: i32) -> (i32, i32) {
    %c0_i32 = arith.constant 0 : i32
    %c0_i32_0 = arith.constant 0 : i32
    %c0_i32_1 = arith.constant 0 : i32
    return %c0_i32, %c0_i32_0 : i32, i32
  }
  func.func @transform_3(%arg0: i32) -> (i32, i32) {
    %c0_i32 = arith.constant 0 : i32
    %c0_i32_0 = arith.constant 0 : i32
    %c0_i32_1 = arith.constant 0 : i32
    return %c0_i32, %c0_i32_0 : i32, i32
  }
  func.func @transform_4(%arg0: i32) -> (i32, i32) {
    %c0_i32 = arith.constant 0 : i32
    %c0_i32_0 = arith.constant 0 : i32
    %c0_i32_1 = arith.constant 0 : i32
    return %c0_i32, %c0_i32_0 : i32, i32
  }
  func.func @transform_5(%arg0: i32) -> (i32, i32) {
    %c0_i32 = arith.constant 0 : i32
    %c0_i32_0 = arith.constant 0 : i32
    %c0_i32_1 = arith.constant 0 : i32
    return %c0_i32, %c0_i32_0 : i32, i32
  }
  func.func @transform_6(%arg0: i32) -> (i32, i32) {
    %c0_i32 = arith.constant 0 : i32
    %c0_i32_0 = arith.constant 0 : i32
    %c0_i32_1 = arith.constant 0 : i32
    return %c0_i32, %c0_i32_0 : i32, i32
  }
  func.func @transform_7(%arg0: i32) -> (i32, i32) {
    %c0_i32 = arith.constant 0 : i32
    %c0_i32_0 = arith.constant 0 : i32
    %c0_i32_1 = arith.constant 0 : i32
    return %c0_i32, %c0_i32_0 : i32, i32
  }
  func.func @transform_8(%arg0: i32) -> (i32, i32) {
    %c0_i32 = arith.constant 0 : i32
    %c0_i32_0 = arith.constant 0 : i32
    %c0_i32_1 = arith.constant 0 : i32
    return %c0_i32, %c0_i32_0 : i32, i32
  }
  func.func @transform_9(%arg0: i32) -> (i32, i32) {
    %c0_i32 = arith.constant 0 : i32
    %c0_i32_0 = arith.constant 0 : i32
    %c0_i32_1 = arith.constant 0 : i32
    return %c0_i32, %c0_i32_0 : i32, i32
  }
  func.func @transform_10(%arg0: i32) -> (i32, i32) {
    %c0_i32 = arith.constant 0 : i32
    %c0_i32_0 = arith.constant 0 : i32
    %c0_i32_1 = arith.constant 0 : i32
    return %c0_i32, %c0_i32_0 : i32, i32
  }
  func.func @transform_11(%arg0: i32) -> (i32, i32) {
    %c0_i32 = arith.constant 0 : i32
    %c0_i32_0 = arith.constant 0 : i32
    %c0_i32_1 = arith.constant 0 : i32
    return %c0_i32, %c0_i32_0 : i32, i32
  }
  func.func @transform_12(%arg0: i32) -> (i32, i32) {
    %c0_i32 = arith.constant 0 : i32
    %c0_i32_0 = arith.constant 0 : i32
    %c0_i32_1 = arith.constant 0 : i32
    return %c0_i32, %c0_i32_0 : i32, i32
  }
  func.func @transform_13(%arg0: i32) -> (i32, i32) {
    %c0_i32 = arith.constant 0 : i32
    %c0_i32_0 = arith.constant 0 : i32
    return %arg0, %c0_i32 : i32, i32
  }
  func.func @transform_14(%arg0: i32) -> (i32, i32) {
    %c0_i32 = arith.constant 0 : i32
    %c0_i32_0 = arith.constant 0 : i32
    return %arg0, %c0_i32 : i32, i32
  }
}

</mosaic_0001>

<llo_original>
// kernel: predictor_forward.1
$region0: #{predictor_forward.1}
  #allocation0 [shape = 'u32[]', space=smem, size = 0x4, offset = 0x4, fixed_abs, tag = 'smem constant byte address 0x4 - core index']
  #allocation1 [shape = 'u32[144,128]{1,0:T(1,128)}', space=vmem, size = 0x12000, scoped, tag = 'internal scratch']
  %s0 = inlined_call_operand.vmem [shape: f32[8,32], index: 0, kind: input, shape index: {}]
  %s1 = inlined_call_operand.vmem [shape: f32[32,64], index: 1, kind: input, shape index: {}]
  %s2 = inlined_call_operand.vmem [shape: f32[1,64], index: 2, kind: input, shape index: {}]
  %s3 = inlined_call_operand.vmem [shape: bf16[64,64], index: 3, kind: input, shape index: {}]
  %s4 = inlined_call_operand.vmem [shape: f32[1,64], index: 4, kind: input, shape index: {}]
  %s5 = inlined_call_operand.vmem [shape: bf16[64,64], index: 5, kind: input, shape index: {}]
  %s6 = inlined_call_operand.vmem [shape: f32[1,64], index: 6, kind: input, shape index: {}]
  %s7 = inlined_call_operand.vmem [shape: bf16[64,256], index: 7, kind: input, shape index: {}]
  %s8 = inlined_call_operand.vmem [shape: f32[1,256], index: 8, kind: input, shape index: {}]
  %s9 = inlined_call_operand.vmem [shape: bf16[256,128], index: 9, kind: input, shape index: {}]
  %s10 = inlined_call_operand.vmem [shape: f32[1,128], index: 10, kind: input, shape index: {}]
  %s11 = inlined_call_operand.vmem [shape: bf16[128,16], index: 11, kind: input, shape index: {}]
  %s12 = inlined_call_operand.vmem [shape: f32[1,16], index: 12, kind: input, shape index: {}]
  %s13 = inlined_call_operand.hbm [shape: f32[8,64], index: 13, kind: output, shape index: {0}]
  %s14 = inlined_call_operand.hbm [shape: f32[8,16], index: 14, kind: output, shape index: {1}]
  %15 = xla_tuple %s13, %s14
  %s16 = sld [smem:[#allocation0]]
  $region70: #{predictor_forward.1} parent=0
    _
  %s18 = ssub.s32 1, %s16
  %s19 = scalar_select 0, %s18, %s16
  $region1: #{predictor_forward.1} parent=0
    #allocation2 [shape = 'u8[4096]{0}', space=vmem, size = 0x1000, scoped, tag = 'output window, operand 0, single buffered']
    #allocation3 [shape = 's32[1]{0}', space=sflag, size = 0x4, scoped, tag = 'scoped memory for predictor_forward.1']
    #allocation4 [shape = 'u8[4096]{0}', space=vmem, size = 0x1000, scoped, tag = 'output window, operand 1, single buffered']
    #allocation5 [shape = 's32[1]{0}', space=sflag, size = 0x4, scoped, tag = 'scoped memory for predictor_forward.1']
    %20 = vsyncpa [#allocation3], 0
    %21 = vsyncpa [#allocation5], 0
    // Predicated region
    $region2: #{predictor_forward.1} parent=1 // pred_check
      _
    $region3: #{predictor_forward.1} parent=1 // pred_check_branch
      %23 = sbr.rel (0) target = $region5
    $region4: #{predictor_forward.1} parent=1 // pred_region
      _
    $region5: #{predictor_forward.1} parent=1 // pred_fallthru
      _
    // Predicated region
    $region6: #{predictor_forward.1} parent=1 // pred_check
      _
    $region7: #{predictor_forward.1} parent=1 // pred_check_branch
      %25 = sbr.rel (0) target = $region9
    $region8: #{predictor_forward.1} parent=1 // pred_region
      _
    $region9: #{predictor_forward.1} parent=1 // pred_fallthru
      _
    // Predicated region
    $region10: #{predictor_forward.1} parent=1 // pred_check
      _
    $region11: #{predictor_forward.1} parent=1 // pred_check_branch
      %27 = sbr.rel (0) target = $region13
    $region12: #{predictor_forward.1} parent=1 // pred_region
      _
    $region13: #{predictor_forward.1} parent=1 // pred_fallthru
      _
    // Predicated region
    $region14: #{predictor_forward.1} parent=1 // pred_check
      _
    $region15: #{predictor_forward.1} parent=1 // pred_check_branch
      %29 = sbr.rel (0) target = $region17
    $region16: #{predictor_forward.1} parent=1 // pred_region
      _
    $region17: #{predictor_forward.1} parent=1 // pred_fallthru
      _
    // Predicated region
    $region18: #{predictor_forward.1} parent=1 // pred_check
      _
    $region19: #{predictor_forward.1} parent=1 // pred_check_branch
      %31 = sbr.rel (0) target = $region21
    $region20: #{predictor_forward.1} parent=1 // pred_region
      _
    $region21: #{predictor_forward.1} parent=1 // pred_fallthru
      _
    // Predicated region
    $region22: #{predictor_forward.1} parent=1 // pred_check
      _
    $region23: #{predictor_forward.1} parent=1 // pred_check_branch
      %33 = sbr.rel (0) target = $region25
    $region24: #{predictor_forward.1} parent=1 // pred_region
      _
    $region25: #{predictor_forward.1} parent=1 // pred_fallthru
      _
    // Predicated region
    $region26: #{predictor_forward.1} parent=1 // pred_check
      _
    $region27: #{predictor_forward.1} parent=1 // pred_check_branch
      %35 = sbr.rel (0) target = $region29
    $region28: #{predictor_forward.1} parent=1 // pred_region
      _
    $region29: #{predictor_forward.1} parent=1 // pred_fallthru
      _
    // Predicated region
    $region30: #{predictor_forward.1} parent=1 // pred_check
      _
    $region31: #{predictor_forward.1} parent=1 // pred_check_branch
      %37 = sbr.rel (0) target = $region33
    $region32: #{predictor_forward.1} parent=1 // pred_region
      _
    $region33: #{predictor_forward.1} parent=1 // pred_fallthru
      _
    // Predicated region
    $region34: #{predictor_forward.1} parent=1 // pred_check
      _
    $region35: #{predictor_forward.1} parent=1 // pred_check_branch
      %39 = sbr.rel (0) target = $region37
    $region36: #{predictor_forward.1} parent=1 // pred_region
      _
    $region37: #{predictor_forward.1} parent=1 // pred_fallthru
      _
    // Predicated region
    $region38: #{predictor_forward.1} parent=1 // pred_check
      _
    $region39: #{predictor_forward.1} parent=1 // pred_check_branch
      %41 = sbr.rel (0) target = $region41
    $region40: #{predictor_forward.1} parent=1 // pred_region
      _
    $region41: #{predictor_forward.1} parent=1 // pred_fallthru
      _
    // Predicated region
    $region42: #{predictor_forward.1} parent=1 // pred_check
      _
    $region43: #{predictor_forward.1} parent=1 // pred_check_branch
      %43 = sbr.rel (0) target = $region45
    $region44: #{predictor_forward.1} parent=1 // pred_region
      _
    $region45: #{predictor_forward.1} parent=1 // pred_fallthru
      _
    // Predicated region
    $region46: #{predictor_forward.1} parent=1 // pred_check
      _
    $region47: #{predictor_forward.1} parent=1 // pred_check_branch
      %45 = sbr.rel (0) target = $region49
    $region48: #{predictor_forward.1} parent=1 // pred_region
      _
    $region49: #{predictor_forward.1} parent=1 // pred_fallthru
      _
    // Predicated region
    $region50: #{predictor_forward.1} parent=1 // pred_check
      _
    $region51: #{predictor_forward.1} parent=1 // pred_check_branch
      %47 = sbr.rel (0) target = $region53
    $region52: #{predictor_forward.1} parent=1 // pred_region
      _
    $region53: #{predictor_forward.1} parent=1 // pred_fallthru
      _
    %v49 = vld [vmem:[%s0] sm:$0xff]
    %v50 = vld [vmem:[%s1] sm:$0xff]
    %v51 = vld [vmem:[%s1 + $0x8] sm:$0xff]
    %v52 = vld [vmem:[%s1 + $0x10] sm:$0xff]
    %v53 = vld [vmem:[%s1 + $0x18] sm:$0xff]
    %v54 = vld [vmem:[%s2] sm:$0x1]
    %v56 = vlaneseq
    %v57 = vshrl.u32 %v56, 7
    %v58 = vsub.s32 0, %v57
    %v59 = vrot.slane %v54, %v58
    %vm61 = vcmask 261120
    %v63 = vsel %vm61, %v49, 0
    %65 = vmatprep.subr.mxu0 0.0
    %66 = vmatpush1.msra.mxu0 0.0
    %67 = vmatprep.subr.mxu0 0.0
    %68 = vmatpush1.msra.mxu0 0.0
    %69 = vmatprep.subr.mxu0 0.0
    %70 = vmatpush1.msra.mxu0 0.0
    %71 = vmatprep.subr.mxu0 0.0
    %72 = vmatpush1.msra.mxu0 0.0
    %73 = vmatprep.subr.mxu0 0.0
    %74 = vmatpush1.msra.mxu0 0.0
    %75 = vmatprep.subr.mxu0 0.0
    %76 = vmatpush1.msra.mxu0 0.0
    %77 = vmatprep.subr.mxu0 0.0
    %78 = vmatpush1.msra.mxu0 0.0
    %79 = vmatprep.subr.mxu0 0.0
    %80 = vmatpush1.msra.mxu0 0.0
    %81 = vmatprep.subr.mxu0 0.0
    %82 = vmatpush1.msra.mxu0 0.0
    %83 = vmatprep.subr.mxu0 0.0
    %84 = vmatpush1.msra.mxu0 0.0
    %85 = vmatprep.subr.mxu0 0.0
    %86 = vmatpush1.msra.mxu0 0.0
    %87 = vmatprep.subr.mxu0 0.0
    %88 = vmatpush1.msra.mxu0 0.0
    %89 = vmatprep.subr.mxu0 0.0
    %90 = vmatpush1.msra.mxu0 %v53
    %91 = vmatprep.subr.mxu0 0.0
    %92 = vmatpush1.msra.mxu0 %v52
    %93 = vmatprep.subr.mxu0 0.0
    %94 = vmatpush1.msra.mxu0 %v51
    %95 = vmatprep.subr.mxu0 0.0
    %96 = vmatpush1.msra.mxu0 %v50
    %97 = vmatprep.subr.mxu0 0.0
    %98 = vmatpush2.msra.mxu0 0.0
    %99 = vmatprep.subr.mxu0 0.0
    %100 = vmatpush2.msra.mxu0 0.0
    %101 = vmatprep.subr.mxu0 0.0
    %102 = vmatpush2.msra.mxu0 0.0
    %103 = vmatprep.subr.mxu0 0.0
    %104 = vmatpush2.msra.mxu0 0.0
    %105 = vmatprep.subr.mxu0 0.0
    %106 = vmatpush2.msra.mxu0 0.0
    %107 = vmatprep.subr.mxu0 0.0
    %108 = vmatpush2.msra.mxu0 0.0
    %109 = vmatprep.subr.mxu0 0.0
    %110 = vmatpush2.msra.mxu0 0.0
    %111 = vmatprep.subr.mxu0 0.0
    %112 = vmatpush2.msra.mxu0 0.0
    %113 = vmatprep.subr.mxu0 0.0
    %114 = vmatpush2.msra.mxu0 0.0
    %115 = vmatprep.subr.mxu0 0.0
    %116 = vmatpush2.msra.mxu0 0.0
    %117 = vmatprep.subr.mxu0 0.0
    %118 = vmatpush2.msra.mxu0 0.0
    %119 = vmatprep.subr.mxu0 0.0
    %120 = vmatpush2.msra.mxu0 0.0
    %121 = vmatprep.subr.mxu0 0.0
    %122 = vmatpush2.msra.mxu0 0.0
    %123 = vmatprep.subr.mxu0 0.0
    %124 = vmatpush2.msra.mxu0 0.0
    %125 = vmatprep.subr.mxu0 0.0
    %126 = vmatpush2.msra.mxu0 0.0
    %127 = vmatprep.subr.mxu0 0.0
    %128 = vmatpush2.msra.mxu0 0.0
    %129 = vmatprep.mubr.f32.mxu0 0.0
    %130 = vmatmul.mubr.f32.gmra.mxu0 %v63
    %v131 = vpop.f32.mrf.mxu0
    %v132 = vadd.f32 %v59, %v131
    %v133 = vpop.f32.mrf.mxu0
    %134 = vdwg.mxu0
    %vm135 = vcmask 523264
    %136 = vst.msk [vmem:[#allocation2] sm:$0xff] %vm135, %v132
    %v137 = vmax.f32 %v132, 0.0
    %v138 = vpack.c.bf16 %v137, %v137
    %v139 = vld [vmem:[%s3] sm:$0xf]
    %v140 = vld [vmem:[%s3 + $0x4] sm:$0xf]
    %v141 = vld [vmem:[%s3 + $0x8] sm:$0xf]
    %v142 = vld [vmem:[%s3 + $0xc] sm:$0xf]
    %v143 = vld [vmem:[%s3 + $0x10] sm:$0xf]
    %v144 = vld [vmem:[%s3 + $0x14] sm:$0xf]
    %v145 = vld [vmem:[%s3 + $0x18] sm:$0xf]
    %v146 = vld [vmem:[%s3 + $0x1c] sm:$0xf]
    %v147 = vld [vmem:[%s4] sm:$0x1]
    %v149 = vlaneseq
    %v150 = vshrl.u32 %v149, 7
    %v151 = vsub.s32 0, %v150
    %v152 = vrot.slane %v147, %v151
    %v162 = vunpack.c.l.b16 %v139
    %v163 = vunpack.c.l.b16 %v140
    %v164 = vunpack.c.l.b16 %v141
    %v165 = vunpack.c.l.b16 %v142
    %v166 = vunpack.c.l.b16 %v143
    %v167 = vunpack.c.l.b16 %v144
    %v168 = vunpack.c.l.b16 %v145
    %v169 = vunpack.c.l.b16 %v146
    %v170 = vpack.c.b16 %v163, %v162
    %v171 = vpack.c.b16 %v165, %v164
    %v172 = vpack.c.b16 %v167, %v166
    %v173 = vpack.c.b16 %v169, %v168
    %v179 = vsel %vm135, %v138, 0
    %181 = vmatprep.subr.bf16.mxu0 0
    %182 = vmatpush1.bf16.msra.mxu0 0
    %183 = vmatprep.subr.bf16.mxu0 0
    %184 = vmatpush1.bf16.msra.mxu0 0
    %185 = vmatprep.subr.bf16.mxu0 0
    %186 = vmatpush1.bf16.msra.mxu0 0
    %187 = vmatprep.subr.bf16.mxu0 0
    %188 = vmatpush1.bf16.msra.mxu0 0
    %189 = vmatprep.subr.bf16.mxu0 0
    %190 = vmatpush1.bf16.msra.mxu0 %v173
    %191 = vmatprep.subr.bf16.mxu0 0
    %192 = vmatpush1.bf16.msra.mxu0 %v172
    %193 = vmatprep.subr.bf16.mxu0 0
    %194 = vmatpush1.bf16.msra.mxu0 %v171
    %195 = vmatprep.subr.bf16.mxu0 0
    %196 = vmatpush1.bf16.msra.mxu0 %v170
    %197 = vmatprep.subr.bf16.mxu0 0
    %198 = vmatpush2.bf16.msra.mxu0 0
    %199 = vmatprep.subr.bf16.mxu0 0
    %200 = vmatpush2.bf16.msra.mxu0 0
    %201 = vmatprep.subr.bf16.mxu0 0
    %202 = vmatpush2.bf16.msra.mxu0 0
    %203 = vmatprep.subr.bf16.mxu0 0
    %204 = vmatpush2.bf16.msra.mxu0 0
    %205 = vmatprep.subr.bf16.mxu0 0
    %206 = vmatpush2.bf16.msra.mxu0 0
    %207 = vmatprep.subr.bf16.mxu0 0
    %208 = vmatpush2.bf16.msra.mxu0 0
    %209 = vmatprep.subr.bf16.mxu0 0
    %210 = vmatpush2.bf16.msra.mxu0 0
    %211 = vmatprep.subr.bf16.mxu0 0
    %212 = vmatpush2.bf16.msra.mxu0 0
    %213 = vmatprep.mubr.bf16.mxu0 0
    %214 = vmatmul.mubr.bf16.gmra.mxu0 %v179
    %v215 = vpop.f32.mrf.mxu0
    %v216 = vadd.f32 %v152, %v215
    %v217 = vpop.f32.mrf.mxu0
    %v218 = vpop.f32.mrf.mxu0
    %v219 = vpop.f32.mrf.mxu0
    %220 = vdwg.mxu0
    %v221 = vmax.f32 %v216, 0.0
    %v222 = vpack.c.bf16 %v221, %v221
    %v223 = vld [vmem:[%s5] sm:$0xf]
    %v224 = vld [vmem:[%s5 + $0x4] sm:$0xf]
    %v225 = vld [vmem:[%s5 + $0x8] sm:$0xf]
    %v226 = vld [vmem:[%s5 + $0xc] sm:$0xf]
    %v227 = vld [vmem:[%s5 + $0x10] sm:$0xf]
    %v228 = vld [vmem:[%s5 + $0x14] sm:$0xf]
    %v229 = vld [vmem:[%s5 + $0x18] sm:$0xf]
    %v230 = vld [vmem:[%s5 + $0x1c] sm:$0xf]
    %v231 = vld [vmem:[%s6] sm:$0x1]
    %v233 = vlaneseq
    %v234 = vshrl.u32 %v233, 7
    %v235 = vsub.s32 0, %v234
    %v236 = vrot.slane %v231, %v235
    %v246 = vunpack.c.l.b16 %v223
    %v247 = vunpack.c.l.b16 %v224
    %v248 = vunpack.c.l.b16 %v225
    %v249 = vunpack.c.l.b16 %v226
    %v250 = vunpack.c.l.b16 %v227
    %v251 = vunpack.c.l.b16 %v228
    %v252 = vunpack.c.l.b16 %v229
    %v253 = vunpack.c.l.b16 %v230
    %v254 = vpack.c.b16 %v247, %v246
    %v255 = vpack.c.b16 %v249, %v248
    %v256 = vpack.c.b16 %v251, %v250
    %v257 = vpack.c.b16 %v253, %v252
    %v263 = vsel %vm135, %v222, 0
    %265 = vmatprep.subr.bf16.mxu0 0
    %266 = vmatpush1.bf16.msra.mxu0 0
    %267 = vmatprep.subr.bf16.mxu0 0
    %268 = vmatpush1.bf16.msra.mxu0 0
    %269 = vmatprep.subr.bf16.mxu0 0
    %270 = vmatpush1.bf16.msra.mxu0 0
    %271 = vmatprep.subr.bf16.mxu0 0
    %272 = vmatpush1.bf16.msra.mxu0 0
    %273 = vmatprep.subr.bf16.mxu0 0
    %274 = vmatpush1.bf16.msra.mxu0 %v257
    %275 = vmatprep.subr.bf16.mxu0 0
    %276 = vmatpush1.bf16.msra.mxu0 %v256
    %277 = vmatprep.subr.bf16.mxu0 0
    %278 = vmatpush1.bf16.msra.mxu0 %v255
    %279 = vmatprep.subr.bf16.mxu0 0
    %280 = vmatpush1.bf16.msra.mxu0 %v254
    %281 = vmatprep.subr.bf16.mxu0 0
    %282 = vmatpush2.bf16.msra.mxu0 0
    %283 = vmatprep.subr.bf16.mxu0 0
    %284 = vmatpush2.bf16.msra.mxu0 0
    %285 = vmatprep.subr.bf16.mxu0 0
    %286 = vmatpush2.bf16.msra.mxu0 0
    %287 = vmatprep.subr.bf16.mxu0 0
    %288 = vmatpush2.bf16.msra.mxu0 0
    %289 = vmatprep.subr.bf16.mxu0 0
    %290 = vmatpush2.bf16.msra.mxu0 0
    %291 = vmatprep.subr.bf16.mxu0 0
    %292 = vmatpush2.bf16.msra.mxu0 0
    %293 = vmatprep.subr.bf16.mxu0 0
    %294 = vmatpush2.bf16.msra.mxu0 0
    %295 = vmatprep.subr.bf16.mxu0 0
    %296 = vmatpush2.bf16.msra.mxu0 0
    %297 = vmatprep.mubr.bf16.mxu0 0
    %298 = vmatmul.mubr.bf16.gmra.mxu0 %v263
    %v299 = vpop.f32.mrf.mxu0
    %v300 = vadd.f32 %v236, %v299
    %v301 = vpop.f32.mrf.mxu0
    %v302 = vpop.f32.mrf.mxu0
    %v303 = vpop.f32.mrf.mxu0
    %304 = vdwg.mxu0
    %v305 = vmax.f32 %v300, 0.0
    %v306 = vpack.c.bf16 %v305, %v305
    %v307 = vld [vmem:[%s7] sm:$0xff]
    %v308 = vld [vmem:[%s7 + $0x8] sm:$0xff]
    %v309 = vld [vmem:[%s7 + $0x10] sm:$0xff]
    %v310 = vld [vmem:[%s7 + $0x18] sm:$0xff]
    %v311 = vld [vmem:[%s7 + $0x20] sm:$0xff]
    %v312 = vld [vmem:[%s7 + $0x28] sm:$0xff]
    %v313 = vld [vmem:[%s7 + $0x30] sm:$0xff]
    %v314 = vld [vmem:[%s7 + $0x38] sm:$0xff]
    %v315 = vld [vmem:[%s8] sm:$0x3]
    %v317 = vlaneseq
    %v318 = vshrl.u32 %v317, 7
    %v319 = vsub.s32 0, %v318
    %v320 = vrot.slane %v315, %v319
    %v321 = vlaneseq
    %v322 = vshrl.u32 %v321, 7
    %v323 = vsub.s32 1, %v322
    %v324 = vrot.slane %v315, %v323
    %v335 = vunpack.c.l.b16 %v307
    %v336 = vunpack.c.h.b16 %v307
    %v337 = vunpack.c.l.b16 %v308
    %v338 = vunpack.c.h.b16 %v308
    %v339 = vunpack.c.l.b16 %v309
    %v340 = vunpack.c.h.b16 %v309
    %v341 = vunpack.c.l.b16 %v310
    %v342 = vunpack.c.h.b16 %v310
    %v343 = vunpack.c.l.b16 %v311
    %v344 = vunpack.c.h.b16 %v311
    %v345 = vunpack.c.l.b16 %v312
    %v346 = vunpack.c.h.b16 %v312
    %v347 = vunpack.c.l.b16 %v313
    %v348 = vunpack.c.h.b16 %v313
    %v349 = vunpack.c.l.b16 %v314
    %v350 = vunpack.c.h.b16 %v314
    %v351 = vpack.c.b16 %v337, %v335
    %v352 = vpack.c.b16 %v338, %v336
    %v353 = vpack.c.b16 %v341, %v339
    %v354 = vpack.c.b16 %v342, %v340
    %v355 = vpack.c.b16 %v345, %v343
    %v356 = vpack.c.b16 %v346, %v344
    %v357 = vpack.c.b16 %v349, %v347
    %v358 = vpack.c.b16 %v350, %v348
    %v368 = vsel %vm135, %v306, 0
    %370 = vmatprep.subr.bf16.mxu0 0
    %371 = vmatpush1.bf16.msra.mxu0 0
    %372 = vmatprep.subr.bf16.mxu0 0
    %373 = vmatpush1.bf16.msra.mxu0 0
    %374 = vmatprep.subr.bf16.mxu0 0
    %375 = vmatpush1.bf16.msra.mxu0 0
    %376 = vmatprep.subr.bf16.mxu0 0
    %377 = vmatpush1.bf16.msra.mxu0 0
    %378 = vmatprep.subr.bf16.mxu0 %v358
    %379 = vmatpush1.bf16.msra.mxu0 %v357
    %380 = vmatprep.subr.bf16.mxu0 %v356
    %381 = vmatpush1.bf16.msra.mxu0 %v355
    %382 = vmatprep.subr.bf16.mxu0 %v354
    %383 = vmatpush1.bf16.msra.mxu0 %v353
    %384 = vmatprep.subr.bf16.mxu0 %v352
    %385 = vmatpush1.bf16.msra.mxu0 %v351
    %386 = vmatprep.subr.bf16.mxu0 0
    %387 = vmatpush2.bf16.msra.mxu0 0
    %388 = vmatprep.subr.bf16.mxu0 0
    %389 = vmatpush2.bf16.msra.mxu0 0
    %390 = vmatprep.subr.bf16.mxu0 0
    %391 = vmatpush2.bf16.msra.mxu0 0
    %392 = vmatprep.subr.bf16.mxu0 0
    %393 = vmatpush2.bf16.msra.mxu0 0
    %394 = vmatprep.subr.bf16.mxu0 0
    %395 = vmatpush2.bf16.msra.mxu0 0
    %396 = vmatprep.subr.bf16.mxu0 0
    %397 = vmatpush2.bf16.msra.mxu0 0
    %398 = vmatprep.subr.bf16.mxu0 0
    %399 = vmatpush2.bf16.msra.mxu0 0
    %400 = vmatprep.subr.bf16.mxu0 0
    %401 = vmatpush2.bf16.msra.mxu0 0
    %402 = vmatprep.mubr.bf16.mxu0 0
    %403 = vmatmul.mubr.bf16.gmra.mxu0 %v368
    %v404 = vpop.f32.mrf.mxu0
    %v405 = vadd.f32 %v320, %v404
    %v406 = vpop.f32.mrf.mxu0
    %v407 = vadd.f32 %v324, %v406
    %v408 = vpop.f32.mrf.mxu0
    %v409 = vpop.f32.mrf.mxu0
    %410 = vdwg.mxu0
    %v411 = vmax.f32 %v405, 0.0
    %v412 = vmax.f32 %v407, 0.0
    %v413 = vpack.c.bf16 %v411, %v411
    %v414 = vpack.c.bf16 %v412, %v412
    %v415 = vld [vmem:[%s9] sm:$0xf]
    %v416 = vld [vmem:[%s9 + $0x4] sm:$0xf]
    %v417 = vld [vmem:[%s9 + $0x8] sm:$0xf]
    %v418 = vld [vmem:[%s9 + $0xc] sm:$0xf]
    %v419 = vld [vmem:[%s9 + $0x10] sm:$0xf]
    %v420 = vld [vmem:[%s9 + $0x14] sm:$0xf]
    %v421 = vld [vmem:[%s9 + $0x18] sm:$0xf]
    %v422 = vld [vmem:[%s9 + $0x1c] sm:$0xf]
    %v423 = vld [vmem:[%s9 + $0x20] sm:$0xf]
    %v424 = vld [vmem:[%s9 + $0x24] sm:$0xf]
    %v425 = vld [vmem:[%s9 + $0x28] sm:$0xf]
    %v426 = vld [vmem:[%s9 + $0x2c] sm:$0xf]
    %v427 = vld [vmem:[%s9 + $0x30] sm:$0xf]
    %v428 = vld [vmem:[%s9 + $0x34] sm:$0xf]
    %v429 = vld [vmem:[%s9 + $0x38] sm:$0xf]
    %v430 = vld [vmem:[%s9 + $0x3c] sm:$0xf]
    %v431 = vld [vmem:[%s9 + $0x40] sm:$0xf]
    %v432 = vld [vmem:[%s9 + $0x44] sm:$0xf]
    %v433 = vld [vmem:[%s9 + $0x48] sm:$0xf]
    %v434 = vld [vmem:[%s9 + $0x4c] sm:$0xf]
    %v435 = vld [vmem:[%s9 + $0x50] sm:$0xf]
    %v436 = vld [vmem:[%s9 + $0x54] sm:$0xf]
    %v437 = vld [vmem:[%s9 + $0x58] sm:$0xf]
    %v438 = vld [vmem:[%s9 + $0x5c] sm:$0xf]
    %v439 = vld [vmem:[%s9 + $0x60] sm:$0xf]
    %v440 = vld [vmem:[%s9 + $0x64] sm:$0xf]
    %v441 = vld [vmem:[%s9 + $0x68] sm:$0xf]
    %v442 = vld [vmem:[%s9 + $0x6c] sm:$0xf]
    %v443 = vld [vmem:[%s9 + $0x70] sm:$0xf]
    %v444 = vld [vmem:[%s9 + $0x74] sm:$0xf]
    %v445 = vld [vmem:[%s9 + $0x78] sm:$0xf]
    %v446 = vld [vmem:[%s9 + $0x7c] sm:$0xf]
    %v447 = vld [vmem:[%s10] sm:$0x1]
    %v449 = vlaneseq
    %v450 = vshrl.u32 %v449, 7
    %v451 = vsub.s32 0, %v450
    %v452 = vrot.slane %v447, %v451
    %v486 = vunpack.c.l.b16 %v415
    %v487 = vunpack.c.l.b16 %v416
    %v488 = vunpack.c.l.b16 %v417
    %v489 = vunpack.c.l.b16 %v418
    %v490 = vunpack.c.l.b16 %v419
    %v491 = vunpack.c.l.b16 %v420
    %v492 = vunpack.c.l.b16 %v421
    %v493 = vunpack.c.l.b16 %v422
    %v494 = vunpack.c.l.b16 %v423
    %v495 = vunpack.c.l.b16 %v424
    %v496 = vunpack.c.l.b16 %v425
    %v497 = vunpack.c.l.b16 %v426
    %v498 = vunpack.c.l.b16 %v427
    %v499 = vunpack.c.l.b16 %v428
    %v500 = vunpack.c.l.b16 %v429
    %v501 = vunpack.c.l.b16 %v430
    %v502 = vunpack.c.l.b16 %v431
    %v503 = vunpack.c.l.b16 %v432
    %v504 = vunpack.c.l.b16 %v433
    %v505 = vunpack.c.l.b16 %v434
    %v506 = vunpack.c.l.b16 %v435
    %v507 = vunpack.c.l.b16 %v436
    %v508 = vunpack.c.l.b16 %v437
    %v509 = vunpack.c.l.b16 %v438
    %v510 = vunpack.c.l.b16 %v439
    %v511 = vunpack.c.l.b16 %v440
    %v512 = vunpack.c.l.b16 %v441
    %v513 = vunpack.c.l.b16 %v442
    %v514 = vunpack.c.l.b16 %v443
    %v515 = vunpack.c.l.b16 %v444
    %v516 = vunpack.c.l.b16 %v445
    %v517 = vunpack.c.l.b16 %v446
    %v518 = vpack.c.b16 %v487, %v486
    %v519 = vpack.c.b16 %v489, %v488
    %v520 = vpack.c.b16 %v491, %v490
    %v521 = vpack.c.b16 %v493, %v492
    %v522 = vpack.c.b16 %v495, %v494
    %v523 = vpack.c.b16 %v497, %v496
    %v524 = vpack.c.b16 %v499, %v498
    %v525 = vpack.c.b16 %v501, %v500
    %v526 = vpack.c.b16 %v503, %v502
    %v527 = vpack.c.b16 %v505, %v504
    %v528 = vpack.c.b16 %v507, %v506
    %v529 = vpack.c.b16 %v509, %v508
    %v530 = vpack.c.b16 %v511, %v510
    %v531 = vpack.c.b16 %v513, %v512
    %v532 = vpack.c.b16 %v515, %v514
    %v533 = vpack.c.b16 %v517, %v516
    %550 = vmatprep.subr.bf16.mxu0 0
    %551 = vmatpush1.bf16.msra.mxu0 %v525
    %552 = vmatprep.subr.bf16.mxu0 0
    %553 = vmatpush1.bf16.msra.mxu0 %v524
    %554 = vmatprep.subr.bf16.mxu0 0
    %555 = vmatpush1.bf16.msra.mxu0 %v523
    %556 = vmatprep.subr.bf16.mxu0 0
    %557 = vmatpush1.bf16.msra.mxu0 %v522
    %558 = vmatprep.subr.bf16.mxu0 0
    %559 = vmatpush1.bf16.msra.mxu0 %v521
    %560 = vmatprep.subr.bf16.mxu0 0
    %561 = vmatpush1.bf16.msra.mxu0 %v520
    %562 = vmatprep.subr.bf16.mxu0 0
    %563 = vmatpush1.bf16.msra.mxu0 %v519
    %564 = vmatprep.subr.bf16.mxu0 0
    %565 = vmatpush1.bf16.msra.mxu0 %v518
    %566 = vmatprep.subr.bf16.mxu0 0
    %567 = vmatpush2.bf16.msra.mxu0 %v533
    %568 = vmatprep.subr.bf16.mxu0 0
    %569 = vmatpush2.bf16.msra.mxu0 %v532
    %570 = vmatprep.subr.bf16.mxu0 0
    %571 = vmatpush2.bf16.msra.mxu0 %v531
    %572 = vmatprep.subr.bf16.mxu0 0
    %573 = vmatpush2.bf16.msra.mxu0 %v530
    %574 = vmatprep.subr.bf16.mxu0 0
    %575 = vmatpush2.bf16.msra.mxu0 %v529
    %576 = vmatprep.subr.bf16.mxu0 0
    %577 = vmatpush2.bf16.msra.mxu0 %v528
    %578 = vmatprep.subr.bf16.mxu0 0
    %579 = vmatpush2.bf16.msra.mxu0 %v527
    %580 = vmatprep.subr.bf16.mxu0 0
    %581 = vmatpush2.bf16.msra.mxu0 %v526
    %582 = vmatprep.mubr.bf16.mxu0 %v414
    %583 = vmatmul.mubr.bf16.gmra.mxu0 %v413
    %v584 = vpop.f32.mrf.mxu0
    %v585 = vadd.f32 %v452, %v584
    %v586 = vpop.f32.mrf.mxu0
    %v587 = vpop.f32.mrf.mxu0
    %v588 = vpop.f32.mrf.mxu0
    %589 = vdwg.mxu0
    %v590 = vmax.f32 %v585, 0.0
    %v591 = vpack.c.bf16 %v590, %v590
    %v592 = vld [vmem:[%s11] sm:$0xf]
    %v593 = vld [vmem:[%s11 + $0x4] sm:$0xf]
    %v594 = vld [vmem:[%s11 + $0x8] sm:$0xf]
    %v595 = vld [vmem:[%s11 + $0xc] sm:$0xf]
    %v596 = vld [vmem:[%s11 + $0x10] sm:$0xf]
    %v597 = vld [vmem:[%s11 + $0x14] sm:$0xf]
    %v598 = vld [vmem:[%s11 + $0x18] sm:$0xf]
    %v599 = vld [vmem:[%s11 + $0x1c] sm:$0xf]
    %v600 = vld [vmem:[%s11 + $0x20] sm:$0xf]
    %v601 = vld [vmem:[%s11 + $0x24] sm:$0xf]
    %v602 = vld [vmem:[%s11 + $0x28] sm:$0xf]
    %v603 = vld [vmem:[%s11 + $0x2c] sm:$0xf]
    %v604 = vld [vmem:[%s11 + $0x30] sm:$0xf]
    %v605 = vld [vmem:[%s11 + $0x34] sm:$0xf]
    %v606 = vld [vmem:[%s11 + $0x38] sm:$0xf]
    %v607 = vld [vmem:[%s11 + $0x3c] sm:$0xf]
    %v608 = vld [vmem:[%s12] sm:$0x1]
    %v610 = vlaneseq
    %v611 = vshrl.u32 %v610, 7
    %v612 = vsub.s32 0, %v611
    %v613 = vrot.slane %v608, %v612
    %v631 = vunpack.c.l.b16 %v592
    %v632 = vunpack.c.l.b16 %v593
    %v633 = vunpack.c.l.b16 %v594
    %v634 = vunpack.c.l.b16 %v595
    %v635 = vunpack.c.l.b16 %v596
    %v636 = vunpack.c.l.b16 %v597
    %v637 = vunpack.c.l.b16 %v598
    %v638 = vunpack.c.l.b16 %v599
    %v639 = vunpack.c.l.b16 %v600
    %v640 = vunpack.c.l.b16 %v601
    %v641 = vunpack.c.l.b16 %v602
    %v642 = vunpack.c.l.b16 %v603
    %v643 = vunpack.c.l.b16 %v604
    %v644 = vunpack.c.l.b16 %v605
    %v645 = vunpack.c.l.b16 %v606
    %v646 = vunpack.c.l.b16 %v607
    %v647 = vpack.c.b16 %v632, %v631
    %v648 = vpack.c.b16 %v634, %v633
    %v649 = vpack.c.b16 %v636, %v635
    %v650 = vpack.c.b16 %v638, %v637
    %v651 = vpack.c.b16 %v640, %v639
    %v652 = vpack.c.b16 %v642, %v641
    %v653 = vpack.c.b16 %v644, %v643
    %v654 = vpack.c.b16 %v646, %v645
    %663 = vmatprep.subr.bf16.mxu0 0
    %664 = vmatpush1.bf16.msra.mxu0 %v654
    %665 = vmatprep.subr.bf16.mxu0 0
    %666 = vmatpush1.bf16.msra.mxu0 %v653
    %667 = vmatprep.subr.bf16.mxu0 0
    %668 = vmatpush1.bf16.msra.mxu0 %v652
    %669 = vmatprep.subr.bf16.mxu0 0
    %670 = vmatpush1.bf16.msra.mxu0 %v651
    %671 = vmatprep.subr.bf16.mxu0 0
    %672 = vmatpush1.bf16.msra.mxu0 %v650
    %673 = vmatprep.subr.bf16.mxu0 0
    %674 = vmatpush1.bf16.msra.mxu0 %v649
    %675 = vmatprep.subr.bf16.mxu0 0
    %676 = vmatpush1.bf16.msra.mxu0 %v648
    %677 = vmatprep.subr.bf16.mxu0 0
    %678 = vmatpush1.bf16.msra.mxu0 %v647
    %679 = vmatprep.subr.bf16.mxu0 0
    %680 = vmatpush2.bf16.msra.mxu0 0
    %681 = vmatprep.subr.bf16.mxu0 0
    %682 = vmatpush2.bf16.msra.mxu0 0
    %683 = vmatprep.subr.bf16.mxu0 0
    %684 = vmatpush2.bf16.msra.mxu0 0
    %685 = vmatprep.subr.bf16.mxu0 0
    %686 = vmatpush2.bf16.msra.mxu0 0
    %687 = vmatprep.subr.bf16.mxu0 0
    %688 = vmatpush2.bf16.msra.mxu0 0
    %689 = vmatprep.subr.bf16.mxu0 0
    %690 = vmatpush2.bf16.msra.mxu0 0
    %691 = vmatprep.subr.bf16.mxu0 0
    %692 = vmatpush2.bf16.msra.mxu0 0
    %693 = vmatprep.subr.bf16.mxu0 0
    %694 = vmatpush2.bf16.msra.mxu0 0
    %695 = vmatprep.mubr.bf16.mxu0 0
    %696 = vmatmul.mubr.bf16.gmra.mxu0 %v591
    %v697 = vpop.f32.mrf.mxu0
    %v698 = vadd.f32 %v613, %v697
    %v699 = vpop.f32.mrf.mxu0
    %v700 = vpop.f32.mrf.mxu0
    %v701 = vpop.f32.mrf.mxu0
    %702 = vdwg.mxu0
    %vm703 = vcmask 130048
    %704 = vst.msk [vmem:[#allocation4] sm:$0xff] %vm703, %v698
    // Predicated region
    $region54: #{predictor_forward.1} parent=1 // pred_check
      _
    $region55: #{predictor_forward.1} parent=1 // pred_check_branch
      %706 = sbr.rel (0) target = $region57
    $region56: #{predictor_forward.1} parent=1 // pred_region
      %s708 = ssub.s32 128, 128
      %709 = vsyncadd [#allocation3], %s708
      %s711 = sshll.u32 [#allocation2], 4
      %s712 = int_to_ptr.vmem [resolvable:$true] %s711
      %714 = dma.vmem_to_hbm [thread:$0]  %s712, 128, %s13, [#allocation3]
    $region57: #{predictor_forward.1} parent=1 // pred_fallthru
      _
    // Predicated region
    $region58: #{predictor_forward.1} parent=1 // pred_check
      _
    $region59: #{predictor_forward.1} parent=1 // pred_check_branch
      %716 = sbr.rel (0) target = $region61
    $region60: #{predictor_forward.1} parent=1 // pred_region
      %s718 = ssub.s32 128, 128
      %719 = vsyncadd [#allocation5], %s718
      %s721 = sshll.u32 [#allocation4], 4
      %s722 = int_to_ptr.vmem [resolvable:$true] %s721
      %724 = dma.vmem_to_hbm [thread:$0]  %s722, 128, %s14, [#allocation5]
    $region61: #{predictor_forward.1} parent=1 // pred_fallthru
      _
    // Predicated region
    $region62: #{predictor_forward.1} parent=1 // pred_check
      _
    $region63: #{predictor_forward.1} parent=1 // pred_check_branch
      %726 = sbr.rel (0) target = $region65
    $region64: #{predictor_forward.1} parent=1 // pred_region
      %727 = dma.done [#allocation3], 128
    $region65: #{predictor_forward.1} parent=1 // pred_fallthru
      _
    // Predicated region
    $region66: #{predictor_forward.1} parent=1 // pred_check
      _
    $region67: #{predictor_forward.1} parent=1 // pred_check_branch
      %729 = sbr.rel (0) target = $region69
    $region68: #{predictor_forward.1} parent=1 // pred_region
      %730 = dma.done [#allocation5], 128
    $region69: #{predictor_forward.1} parent=1 // pred_fallthru
      _
    %731 = vsyncpa [#allocation3], 1
    %732 = vsyncpa [#allocation5], 1

</llo_original>
